<compile_context>
chip_gen: v5e
topology: v5e:2x2
jax: 0.10.0
libtpu: 0.0.40
codegen_flags: <defaults>
</compile_context>

<pallas_src>
import functools

import jax
import jax.numpy as jnp
from jax.experimental import pallas as pl
from jax.experimental.pallas import tpu as pltpu

LANE = 128    # vreg lane width
SUB = 8       # f32 sublane count
ALIGN = 16    # bf16 sublane packing (also satisfies f32's 8)
HIDDEN = 64   # DQN hidden width (nn.Linear(., 64))


def _round_up(a, m):
    return (a + m - 1) // m * m


# ----------------------------------------------------------------------------
# Parameter packing.
#
# Weight slab (bf16, (16,128)-aligned row sections, all padding zero):
#   rows [0, in_pad)               : W1  (input_size x 64 in the top-left)
#   rows [in_pad, in_pad+128)      : W2  (64 x 64 in the top-left)
#   rows [in_pad+128, in_pad+256)  : W3  (64 x out_size in the top-left)
#
# Bias block (f32, (8,128)): row0=b1, row1=b2, row2=b3, rest zero.
#
# Zero padding makes the padded lanes of h1/h2/out exactly zero, so the kernel
# runs everything 128 lanes wide and the wrapper just slices the result.
# ----------------------------------------------------------------------------
def pack_dqn_params(params, input_size, output_size, hidden=HIDDEN):
    in_pad = _round_up(input_size, ALIGN)
    rows = in_pad + 2 * LANE

    w_slab = jnp.zeros((rows, LANE), jnp.bfloat16)
    w_slab = w_slab.at[:input_size, :hidden].set(
        params["w1"].astype(jnp.bfloat16))
    w_slab = w_slab.at[in_pad:in_pad + hidden, :hidden].set(
        params["w2"].astype(jnp.bfloat16))
    w_slab = w_slab.at[in_pad + LANE:in_pad + LANE + hidden, :output_size].set(
        params["w3"].astype(jnp.bfloat16))

    b_slab = jnp.zeros((SUB, LANE), jnp.float32)
    b_slab = b_slab.at[0, :hidden].set(params["b1"].reshape(-1))
    b_slab = b_slab.at[1, :hidden].set(params["b2"].reshape(-1))
    b_slab = b_slab.at[2, :output_size].set(params["b3"].reshape(-1))

    meta = dict(in_pad=in_pad, rows=rows)
    return (w_slab, b_slab), meta


# ----------------------------------------------------------------------------
# Kernel: one batch tile per grid step.
# ----------------------------------------------------------------------------
def dqn_kernel(x_ref, w_ref, b_ref, o_ref, *, in_pad):
    r2 = in_pad           # start of W2 rows
    r3 = in_pad + LANE    # start of W3 rows
    r4 = in_pad + 2 * LANE

    x = x_ref[...].astype(jnp.bfloat16)    # (TB, in_pad) fresh per tile
    w1 = w_ref[0:r2, :]                    # (in_pad, 128) bf16, pre-packed
    w2 = w_ref[r2:r3, :]                   # (128, 128) bf16
    w3 = w_ref[r3:r4, :]                   # (128, 128) bf16
    b1 = b_ref[0:1, :]                     # (1, 128) f32
    b2 = b_ref[1:2, :]
    b3 = b_ref[2:3, :]

    # bf16 MXU operands, f32 accumulation; bias+ReLU epilogue in f32 on VPU.
    h1 = jnp.dot(x, w1, preferred_element_type=jnp.float32)
    h1 = jnp.maximum(h1 + b1, 0.0).astype(jnp.bfloat16)        # (TB, 128)
    h2 = jnp.dot(h1, w2, preferred_element_type=jnp.float32)
    h2 = jnp.maximum(h2 + b2, 0.0).astype(jnp.bfloat16)        # (TB, 128)
    out = jnp.dot(h2, w3, preferred_element_type=jnp.float32)  # (TB, 128)
    o_ref[...] = (out + b3).astype(o_ref.dtype)  # lane-dense bf16 store


# ----------------------------------------------------------------------------
# Batch tiling: as large as possible (<= tb_max) but at least 2 tiles when
# the batch allows it (v7x has 2 TensorCores), aligned to 16 rows so the
# bf16 output block keeps native (16,128) packing.
# ----------------------------------------------------------------------------
def _batch_tiling(B, tb_max=1024):
    if B <= ALIGN:
        return ALIGN, ALIGN                      # single small tile
    n_tiles = max(2, -(-B // tb_max))            # >= 2 tiles, more if B huge
    tb = _round_up(-(-B // n_tiles), ALIGN)
    return tb, n_tiles * tb


# ----------------------------------------------------------------------------
# Wrapper.
# ----------------------------------------------------------------------------
def dqn_forward(x, packed, meta, output_size, *, tb_max=1024):
    """x: (B, input_size) float32. packed/meta: from pack_dqn_params."""
    w_slab, b_slab = packed
    B, in_features = x.shape
    in_pad, rows = meta["in_pad"], meta["rows"]

    tb, pb = _batch_tiling(B, tb_max)

    # Only pad when actually required (avoid re-materializing x through HBM).
    if pb != B or in_pad != in_features:
        xp = jnp.pad(x, ((0, pb - B), (0, in_pad - in_features)))
    else:
        xp = x

    out_padded = pl.pallas_call(
        functools.partial(dqn_kernel, in_pad=in_pad),
        out_shape=jax.ShapeDtypeStruct((pb, LANE), jnp.bfloat16),
        grid=(pb // tb,),
        in_specs=[
            pl.BlockSpec((tb, in_pad), lambda i: (i, 0)),
            # Constant block index -> weight slab / biases stay VMEM-resident.
            pl.BlockSpec((rows, LANE), lambda i: (0, 0)),
            pl.BlockSpec((SUB, LANE), lambda i: (0, 0)),
        ],
        out_specs=pl.BlockSpec((tb, LANE), lambda i: (i, 0)),
        compiler_params=pltpu.CompilerParams(
            dimension_semantics=("parallel",),   # megacore sharding on v7x
        ),
    )(xp, w_slab, b_slab)

    # Tiny slice + upcast (B x out_size); HBM writeback above stayed bf16.
    return out_padded[:B, :output_size].astype(jnp.float32)


# ----------------------------------------------------------------------------
# Init / references
# ----------------------------------------------------------------------------
def init_dqn_params(key, input_size, output_size, hidden=HIDDEN):
    """Mimics nn.Linear init U(-1/sqrt(fan_in), 1/sqrt(fan_in)).
    Weights stored transposed: (in_features, out_features)."""
    ks = jax.random.split(key, 6)

    def linear(kw, kb, fan_in, fan_out):
        bound = 1.0 / jnp.sqrt(jnp.float32(fan_in))
        w = jax.random.uniform(kw, (fan_in, fan_out), jnp.float32, -bound, bound)
        b = jax.random.uniform(kb, (1, fan_out), jnp.float32, -bound, bound)
        return w, b

    w1, b1 = linear(ks[0], ks[1], input_size, hidden)
    w2, b2 = linear(ks[2], ks[3], hidden, hidden)
    w3, b3 = linear(ks[4], ks[5], hidden, output_size)
    return {"w1": w1, "b1": b1, "w2": w2, "b2": b2, "w3": w3, "b3": b3}


def dqn_reference_bf16(x, p):
    """Mirrors the kernel's numerics: bf16 matmul operands, f32 accumulation."""
    bf = jnp.bfloat16

    def lin(h, w, b):
        return jnp.dot(h.astype(bf), w.astype(bf),
                       preferred_element_type=jnp.float32) + b

    h1 = jnp.maximum(lin(x, p["w1"], p["b1"]), 0.0)
    h2 = jnp.maximum(lin(h1, p["w2"], p["b2"]), 0.0)
    return lin(h2, p["w3"], p["b3"])


def dqn_reference_f32(x, p):
    h1 = jnp.maximum(x @ p["w1"] + p["b1"], 0.0)
    h2 = jnp.maximum(h1 @ p["w2"] + p["b2"], 0.0)
    return h2 @ p["w3"] + p["b3"]


if __name__ == "__main__":
    key = jax.random.PRNGKey(0)
    k_param, k_x, k_x2 = jax.random.split(key, 3)

    input_size = 16   # observation dim
    output_size = 4   # number of actions

    params = init_dqn_params(k_param, input_size, output_size)
    packed, meta = pack_dqn_params(params, input_size, output_size)

    # Small online-inference batch (matches the toy usage).
    batch = 2
    x = jax.random.normal(k_x, (batch, input_size), jnp.float32)
    out = dqn_forward(x, packed, meta, output_size)
    jax.block_until_ready(out)

    assert out.shape == (batch, output_size)
    # Output is stored in bf16 -> loosened tolerance vs references.
    assert jnp.allclose(out, dqn_reference_bf16(x, params), atol=1e-2, rtol=1e-2)
    assert jnp.allclose(out, dqn_reference_f32(x, params), atol=1e-1, rtol=1e-1)

    # Larger replay-style batch: exercises the 2-tile grid + ragged batch pad.
    batch2 = 300
    x2 = jax.random.normal(k_x2, (batch2, input_size), jnp.float32)
    out2 = dqn_forward(x2, packed, meta, output_size)
    jax.block_until_ready(out2)

    assert out2.shape == (batch2, output_size)
    assert jnp.allclose(out2, dqn_reference_bf16(x2, params), atol=1e-2, rtol=1e-2)
    assert jnp.allclose(out2, dqn_reference_f32(x2, params), atol=1e-1, rtol=1e-1)

    print("KERNEL_OK")
</pallas_src>

<mosaic_0001>
module attributes {stable_mosaic.version = 11 : i64} {
  func.func @dqn_kernel(%arg0: i32, %arg1: memref<16x16xf32, #tpu.memory_space<vmem>>, %arg2: memref<272x128xbf16, #tpu.memory_space<vmem>>, %arg3: memref<8x128xf32, #tpu.memory_space<vmem>>, %arg4: memref<16x128xbf16, #tpu.memory_space<vmem>>) attributes {dimension_semantics = [#tpu.dimension_semantics<parallel>], iteration_bounds = array<i64: 1>, scalar_prefetch = 0 : i64, scratch_operands = 0 : i64, tpu.core_type = #tpu.core_type<tc>, window_params = [{transform_indices = @transform_0, window_bounds = array<i64: 16, 16>}, {pipeline_mode = #tpu.pipeline_mode<synchronous>, transform_indices = @transform_1, window_bounds = array<i64: 272, 128>}, {pipeline_mode = #tpu.pipeline_mode<synchronous>, transform_indices = @transform_2, window_bounds = array<i64: 8, 128>}, {transform_indices = @transform_3, window_bounds = array<i64: 16, 128>}]} {
    %c0 = arith.constant 0 : index
    %c0_0 = arith.constant 0 : index
    %0 = vector.load %arg1[%c0, %c0_0] : memref<16x16xf32, #tpu.memory_space<vmem>>, vector<16x16xf32>
    %1 = arith.truncf %0 : vector<16x16xf32> to vector<16x16xbf16>
    %c0_1 = arith.constant 0 : index
    %c0_2 = arith.constant 0 : index
    %2 = vector.load %arg2[%c0_1, %c0_2] : memref<272x128xbf16, #tpu.memory_space<vmem>>, vector<16x128xbf16>
    %c16 = arith.constant 16 : index
    %c0_3 = arith.constant 0 : index
    %3 = vector.load %arg2[%c16, %c0_3] : memref<272x128xbf16, #tpu.memory_space<vmem>>, vector<128x128xbf16>
    %c144 = arith.constant 144 : index
    %c0_4 = arith.constant 0 : index
    %4 = vector.load %arg2[%c144, %c0_4] : memref<272x128xbf16, #tpu.memory_space<vmem>>, vector<128x128xbf16>
    %c0_5 = arith.constant 0 : index
    %c0_6 = arith.constant 0 : index
    %5 = vector.load %arg3[%c0_5, %c0_6] : memref<8x128xf32, #tpu.memory_space<vmem>>, vector<1x128xf32>
    %c1 = arith.constant 1 : index
    %c0_7 = arith.constant 0 : index
    %6 = vector.load %arg3[%c1, %c0_7] : memref<8x128xf32, #tpu.memory_space<vmem>>, vector<1x128xf32>
    %c2 = arith.constant 2 : index
    %c0_8 = arith.constant 0 : index
    %7 = vector.load %arg3[%c2, %c0_8] : memref<8x128xf32, #tpu.memory_space<vmem>>, vector<1x128xf32>
    %cst = arith.constant dense<0.000000e+00> : vector<16x128xf32>
    %8 = tpu.matmul %1, %2, %cst {dimension_numbers = #tpu.dot_dimension_numbers<[1], [0], [0], [1], [0, 0, 1, 1], [], []>} : vector<16x16xbf16>, vector<16x128xbf16>, vector<16x128xf32> -> vector<16x128xf32>
    %9 = vector.broadcast %5 : vector<1x128xf32> to vector<16x128xf32>
    %10 = arith.addf %8, %9 : vector<16x128xf32>
    %cst_9 = arith.constant 0.000000e+00 : f32
    %11 = vector.broadcast %cst_9 : f32 to vector<16x128xf32>
    %12 = arith.maximumf %10, %11 : vector<16x128xf32>
    %13 = arith.truncf %12 : vector<16x128xf32> to vector<16x128xbf16>
    %cst_10 = arith.constant dense<0.000000e+00> : vector<16x128xf32>
    %14 = tpu.matmul %13, %3, %cst_10 {dimension_numbers = #tpu.dot_dimension_numbers<[1], [0], [0], [1], [0, 0, 1, 1], [], []>} : vector<16x128xbf16>, vector<128x128xbf16>, vector<16x128xf32> -> vector<16x128xf32>
    %15 = vector.broadcast %6 : vector<1x128xf32> to vector<16x128xf32>
    %16 = arith.addf %14, %15 : vector<16x128xf32>
    %cst_11 = arith.constant 0.000000e+00 : f32
    %17 = vector.broadcast %cst_11 : f32 to vector<16x128xf32>
    %18 = arith.maximumf %16, %17 : vector<16x128xf32>
    %19 = arith.truncf %18 : vector<16x128xf32> to vector<16x128xbf16>
    %cst_12 = arith.constant dense<0.000000e+00> : vector<16x128xf32>
    %20 = tpu.matmul %19, %4, %cst_12 {dimension_numbers = #tpu.dot_dimension_numbers<[1], [0], [0], [1], [0, 0, 1, 1], [], []>} : vector<16x128xbf16>, vector<128x128xbf16>, vector<16x128xf32> -> vector<16x128xf32>
    %21 = vector.broadcast %7 : vector<1x128xf32> to vector<16x128xf32>
    %22 = arith.addf %20, %21 : vector<16x128xf32>
    %23 = arith.truncf %22 : vector<16x128xf32> to vector<16x128xbf16>
    %c0_13 = arith.constant 0 : index
    %c0_14 = arith.constant 0 : index
    %24 = vector.load %arg4[%c0_13, %c0_14] : memref<16x128xbf16, #tpu.memory_space<vmem>>, vector<16x128xbf16>
    tpu.vector_store %arg4[%c0_13, %c0_14], %23 {strides = array<i32>} : memref<16x128xbf16, #tpu.memory_space<vmem>>, vector<16x128xbf16>,
    return
  }
  func.func @transform_0(%arg0: i32) -> (i32, i32) {
    %c0_i32 = arith.constant 0 : i32
    %c0_i32_0 = arith.constant 0 : i32
    return %arg0, %c0_i32 : i32, i32
  }
  func.func @transform_1(%arg0: i32) -> (i32, i32) {
    %c0_i32 = arith.constant 0 : i32
    %c0_i32_0 = arith.constant 0 : i32
    %c0_i32_1 = arith.constant 0 : i32
    return %c0_i32, %c0_i32_0 : i32, i32
  }
  func.func @transform_2(%arg0: i32) -> (i32, i32) {
    %c0_i32 = arith.constant 0 : i32
    %c0_i32_0 = arith.constant 0 : i32
    %c0_i32_1 = arith.constant 0 : i32
    return %c0_i32, %c0_i32_0 : i32, i32
  }
  func.func @transform_3(%arg0: i32) -> (i32, i32) {
    %c0_i32 = arith.constant 0 : i32
    %c0_i32_0 = arith.constant 0 : i32
    return %arg0, %c0_i32 : i32, i32
  }
}

</mosaic_0001>

<llo_original>
// kernel: tpu_custom_call.1
$region0: #{tpu_custom_call.1}
  #allocation0 [shape = 'u32[]', space=smem, size = 0x4, offset = 0x4, fixed_abs, tag = 'smem constant byte address 0x4 - core index']
  #allocation1 [shape = 'u32[72,128]{1,0:T(1,128)}', space=vmem, size = 0x9000, scoped, tag = 'internal scratch']
  %s0 = inlined_call_operand.hbm [shape: f32[16,16], index: 0, kind: input, shape index: {}]
  %s1 = inlined_call_operand.hbm [shape: bf16[272,128], index: 1, kind: input, shape index: {}]
  %s2 = inlined_call_operand.hbm [shape: f32[8,128], index: 2, kind: input, shape index: {}]
  %s3 = inlined_call_operand.hbm [shape: bf16[16,128], index: 3, kind: output, shape index: {}]
  %s4 = sld [smem:[#allocation0]]
  $region34: #{tpu_custom_call.1} parent=0
    _
  %s6 = ssub.s32 1, %s4
  %s7 = scalar_select 0, %s6, %s4
  $region1: #{tpu_custom_call.1} parent=0
    #allocation2 [shape = 'u8[8192]{0}', space=vmem, size = 0x2000, scoped, tag = 'input window, operand 0, single buffered']
    #allocation3 [shape = 's32[1]{0}', space=sflag, size = 0x4, scoped, tag = 'scoped memory for tpu_custom_call.1']
    #allocation4 [shape = 's32[1]{0}', space=sflag, size = 0x4, scoped, tag = 'scoped memory for tpu_custom_call.1']
    #allocation5 [shape = 'u8[69632]{0}', space=vmem, size = 0x11000, scoped, tag = 'input window, operand 1, single buffered']
    #allocation6 [shape = 's32[1]{0}', space=sflag, size = 0x4, scoped, tag = 'scoped memory for tpu_custom_call.1']
    #allocation7 [shape = 'u8[4096]{0}', space=vmem, size = 0x1000, scoped, tag = 'input window, operand 2, single buffered']
    #allocation8 [shape = 'u8[4096]{0}', space=vmem, size = 0x1000, scoped, tag = 'output window, operand 0, single buffered']
    %8 = vsyncpa [#allocation3], 0
    %9 = vsyncpa [#allocation6], 0
    %10 = vsyncpa [#allocation4], 0
    // Predicated region
    $region2: #{tpu_custom_call.1} parent=1 // pred_check
      _
    $region3: #{tpu_custom_call.1} parent=1 // pred_check_branch
      %12 = sbr.rel (0) target = $region5
    $region4: #{tpu_custom_call.1} parent=1 // pred_region
      %14 = vsyncadd [#allocation3], 0
      %s15 = sshll.u32 %s0, 4
      %s16 = int_to_ptr.hbm [resolvable:$true] %s15
      %s17 = sshll.u32 [#allocation2], 4
      %s18 = int_to_ptr.vmem [resolvable:$true] %s17
      %23 = dma.hbm_to_vmem [thread:$0]  %s16, 256, %s18, [#allocation3], 128, 128, 8
    $region5: #{tpu_custom_call.1} parent=1 // pred_fallthru
      _
    // Predicated region
    $region6: #{tpu_custom_call.1} parent=1 // pred_check
      _
    $region7: #{tpu_custom_call.1} parent=1 // pred_check_branch
      %25 = sbr.rel (0) target = $region9
    $region8: #{tpu_custom_call.1} parent=1 // pred_region
      %27 = vsyncadd [#allocation6], 0
      %s28 = sshll.u32 %s1, 4
      %s29 = int_to_ptr.hbm [resolvable:$true] %s28
      %s30 = sshll.u32 [#allocation5], 4
      %s31 = int_to_ptr.vmem [resolvable:$true] %s30
      %36 = dma.hbm_to_vmem [thread:$0]  %s29, 2176, %s31, [#allocation6], 64, 64, 4
    $region9: #{tpu_custom_call.1} parent=1 // pred_fallthru
      _
    // Predicated region
    $region10: #{tpu_custom_call.1} parent=1 // pred_check
      _
    $region11: #{tpu_custom_call.1} parent=1 // pred_check_branch
      %38 = sbr.rel (0) target = $region13
    $region12: #{tpu_custom_call.1} parent=1 // pred_region
      %40 = vsyncadd [#allocation6], 0
      %s42 = sshll.u32 %s2, 4
      %s43 = int_to_ptr.hbm [resolvable:$true] %s42
      %s44 = sshll.u32 [#allocation7], 4
      %s45 = int_to_ptr.vmem [resolvable:$true] %s44
      %47 = dma.hbm_to_vmem [thread:$0]  %s43, 128, %s45, [#allocation6]
    $region13: #{tpu_custom_call.1} parent=1 // pred_fallthru
      _
    // Predicated region
    $region14: #{tpu_custom_call.1} parent=1 // pred_check
      _
    $region15: #{tpu_custom_call.1} parent=1 // pred_check_branch
      %49 = sbr.rel (0) target = $region17
    $region16: #{tpu_custom_call.1} parent=1 // pred_region
      %51 = dma.done [#allocation3], 256
    $region17: #{tpu_custom_call.1} parent=1 // pred_fallthru
      _
    // Predicated region
    $region18: #{tpu_custom_call.1} parent=1 // pred_check
      _
    $region19: #{tpu_custom_call.1} parent=1 // pred_check_branch
      %53 = sbr.rel (0) target = $region21
    $region20: #{tpu_custom_call.1} parent=1 // pred_region
      %55 = dma.done [#allocation6], 2176
    $region21: #{tpu_custom_call.1} parent=1 // pred_fallthru
      _
    // Predicated region
    $region22: #{tpu_custom_call.1} parent=1 // pred_check
      _
    $region23: #{tpu_custom_call.1} parent=1 // pred_check_branch
      %57 = sbr.rel (0) target = $region25
    $region24: #{tpu_custom_call.1} parent=1 // pred_region
      %59 = dma.done [#allocation6], 128
    $region25: #{tpu_custom_call.1} parent=1 // pred_fallthru
      _
    %v61 = vld [vmem:[#allocation2] sm:$0xff]
    %v62 = vld [vmem:[#allocation2 + $0x8] sm:$0xff]
    %v63 = vpack.c.bf16 %v62, %v61
    %v64 = vld [vmem:[#allocation5] sm:$0xf]
    %v65 = vld [vmem:[#allocation5 + $0x4] sm:$0xf]
    %v66 = vld [vmem:[#allocation5 + $0x8] sm:$0xf]
    %v67 = vld [vmem:[#allocation5 + $0xc] sm:$0xf]
    %v68 = vld [vmem:[#allocation5 + $0x10] sm:$0xf]
    %v69 = vld [vmem:[#allocation5 + $0x14] sm:$0xf]
    %v70 = vld [vmem:[#allocation5 + $0x18] sm:$0xf]
    %v71 = vld [vmem:[#allocation5 + $0x1c] sm:$0xf]
    %v72 = vld [vmem:[#allocation5 + $0x20] sm:$0xf]
    %v73 = vld [vmem:[#allocation5 + $0x24] sm:$0xf]
    %v74 = vld [vmem:[#allocation5 + $0x28] sm:$0xf]
    %v75 = vld [vmem:[#allocation5 + $0x2c] sm:$0xf]
    %v76 = vld [vmem:[#allocation5 + $0x30] sm:$0xf]
    %v77 = vld [vmem:[#allocation5 + $0x34] sm:$0xf]
    %v78 = vld [vmem:[#allocation5 + $0x38] sm:$0xf]
    %v79 = vld [vmem:[#allocation5 + $0x3c] sm:$0xf]
    %v80 = vld [vmem:[#allocation5 + $0x40] sm:$0xf]
    %v81 = vld [vmem:[#allocation5 + $0x44] sm:$0xf]
    %v82 = vld [vmem:[#allocation5 + $0x48] sm:$0xf]
    %v83 = vld [vmem:[#allocation5 + $0x4c] sm:$0xf]
    %v84 = vld [vmem:[#allocation5 + $0x50] sm:$0xf]
    %v85 = vld [vmem:[#allocation5 + $0x54] sm:$0xf]
    %v86 = vld [vmem:[#allocation5 + $0x58] sm:$0xf]
    %v87 = vld [vmem:[#allocation5 + $0x5c] sm:$0xf]
    %v88 = vld [vmem:[#allocation5 + $0x60] sm:$0xf]
    %v89 = vld [vmem:[#allocation5 + $0x64] sm:$0xf]
    %v90 = vld [vmem:[#allocation5 + $0x68] sm:$0xf]
    %v91 = vld [vmem:[#allocation5 + $0x6c] sm:$0xf]
    %v92 = vld [vmem:[#allocation5 + $0x70] sm:$0xf]
    %v93 = vld [vmem:[#allocation5 + $0x74] sm:$0xf]
    %v94 = vld [vmem:[#allocation5 + $0x78] sm:$0xf]
    %v95 = vld [vmem:[#allocation5 + $0x7c] sm:$0xf]
    %v96 = vld [vmem:[#allocation5 + $0x80] sm:$0xf]
    %v97 = vld [vmem:[#allocation5 + $0x84] sm:$0xf]
    %v98 = vld [vmem:[#allocation7] sm:$0x1]
    %v99 = vld [vmem:[#allocation7 + $0x1] sm:$0x1]
    %v100 = vld [vmem:[#allocation7 + $0x2] sm:$0x1]
    %v101 = vperm.slane %v98, 0
    %v104 = vunpack.c.l.b16 %v64
    %v105 = vunpack.c.l.b16 %v65
    %v106 = vpack.c.b16 %v105, %v104
    %vm108 = vcmask 130048
    %v110 = vsel %vm108, %v63, 0
    %112 = vmatpush.bf16.msra.mxu0 0
    %113 = vmatpush.bf16.msra.mxu0 0
    %114 = vmatpush.bf16.msra.mxu0 0
    %115 = vmatpush.bf16.msra.mxu0 0
    %116 = vmatpush.bf16.msra.mxu0 0
    %117 = vmatpush.bf16.msra.mxu0 0
    %118 = vmatpush.bf16.msra.mxu0 0
    %119 = vmatpush.bf16.msra.mxu0 %v106
    %120 = vmatmul.bf16.gmra.mxu0 %v110
    %v121 = vpop.f32.mrf.mxu0
    %v122 = vadd.f32 %v101, %v121
    %v123 = vpop.f32.mrf.mxu0
    %v124 = vadd.f32 %v101, %v123
    %125 = vdwg.mxu0
    %v126 = vmax.f32 %v122, 0.0
    %v127 = vmax.f32 %v124, 0.0
    %v128 = vpack.c.bf16 %v127, %v126
    %v129 = vperm.slane %v99, 0
    %v146 = vunpack.c.l.b16 %v66
    %v147 = vunpack.c.l.b16 %v67
    %v148 = vunpack.c.l.b16 %v68
    %v149 = vunpack.c.l.b16 %v69
    %v150 = vunpack.c.l.b16 %v70
    %v151 = vunpack.c.l.b16 %v71
    %v152 = vunpack.c.l.b16 %v72
    %v153 = vunpack.c.l.b16 %v73
    %v154 = vunpack.c.l.b16 %v74
    %v155 = vunpack.c.l.b16 %v75
    %v156 = vunpack.c.l.b16 %v76
    %v157 = vunpack.c.l.b16 %v77
    %v158 = vunpack.c.l.b16 %v78
    %v159 = vunpack.c.l.b16 %v79
    %v160 = vunpack.c.l.b16 %v80
    %v161 = vunpack.c.l.b16 %v81
    %v162 = vpack.c.b16 %v147, %v146
    %v163 = vpack.c.b16 %v149, %v148
    %v164 = vpack.c.b16 %v151, %v150
    %v165 = vpack.c.b16 %v153, %v152
    %v166 = vpack.c.b16 %v155, %v154
    %v167 = vpack.c.b16 %v157, %v156
    %v168 = vpack.c.b16 %v159, %v158
    %v169 = vpack.c.b16 %v161, %v160
    %178 = vmatpush.bf16.msra.mxu0 %v169
    %179 = vmatpush.bf16.msra.mxu0 %v168
    %180 = vmatpush.bf16.msra.mxu0 %v167
    %181 = vmatpush.bf16.msra.mxu0 %v166
    %182 = vmatpush.bf16.msra.mxu0 %v165
    %183 = vmatpush.bf16.msra.mxu0 %v164
    %184 = vmatpush.bf16.msra.mxu0 %v163
    %185 = vmatpush.bf16.msra.mxu0 %v162
    %186 = vmatmul.bf16.gmra.mxu0 %v128
    %v187 = vpop.f32.mrf.mxu0
    %v188 = vadd.f32 %v129, %v187
    %v189 = vpop.f32.mrf.mxu0
    %v190 = vadd.f32 %v129, %v189
    %191 = vdwg.mxu0
    %v192 = vmax.f32 %v188, 0.0
    %v193 = vmax.f32 %v190, 0.0
    %v194 = vpack.c.bf16 %v193, %v192
    %v195 = vperm.slane %v100, 0
    %v212 = vunpack.c.l.b16 %v82
    %v213 = vunpack.c.l.b16 %v83
    %v214 = vunpack.c.l.b16 %v84
    %v215 = vunpack.c.l.b16 %v85
    %v216 = vunpack.c.l.b16 %v86
    %v217 = vunpack.c.l.b16 %v87
    %v218 = vunpack.c.l.b16 %v88
    %v219 = vunpack.c.l.b16 %v89
    %v220 = vunpack.c.l.b16 %v90
    %v221 = vunpack.c.l.b16 %v91
    %v222 = vunpack.c.l.b16 %v92
    %v223 = vunpack.c.l.b16 %v93
    %v224 = vunpack.c.l.b16 %v94
    %v225 = vunpack.c.l.b16 %v95
    %v226 = vunpack.c.l.b16 %v96
    %v227 = vunpack.c.l.b16 %v97
    %v228 = vpack.c.b16 %v213, %v212
    %v229 = vpack.c.b16 %v215, %v214
    %v230 = vpack.c.b16 %v217, %v216
    %v231 = vpack.c.b16 %v219, %v218
    %v232 = vpack.c.b16 %v221, %v220
    %v233 = vpack.c.b16 %v223, %v222
    %v234 = vpack.c.b16 %v225, %v224
    %v235 = vpack.c.b16 %v227, %v226
    %244 = vmatpush.bf16.msra.mxu0 %v235
    %245 = vmatpush.bf16.msra.mxu0 %v234
    %246 = vmatpush.bf16.msra.mxu0 %v233
    %247 = vmatpush.bf16.msra.mxu0 %v232
    %248 = vmatpush.bf16.msra.mxu0 %v231
    %249 = vmatpush.bf16.msra.mxu0 %v230
    %250 = vmatpush.bf16.msra.mxu0 %v229
    %251 = vmatpush.bf16.msra.mxu0 %v228
    %252 = vmatmul.bf16.gmra.mxu0 %v194
    %v253 = vpop.f32.mrf.mxu0
    %v254 = vadd.f32 %v195, %v253
    %v255 = vpop.f32.mrf.mxu0
    %v256 = vadd.f32 %v195, %v255
    %257 = vdwg.mxu0
    %v258 = vpack.c.bf16 %v254, %v254
    %v259 = vpack.c.bf16 %v256, %v256
    %260 = vst [vmem:[#allocation8] sm:$0xf] %v258
    %261 = vst [vmem:[#allocation8 + $0x4] sm:$0xf] %v259
    // Predicated region
    $region26: #{tpu_custom_call.1} parent=1 // pred_check
      _
    $region27: #{tpu_custom_call.1} parent=1 // pred_check_branch
      %263 = sbr.rel (0) target = $region29
    $region28: #{tpu_custom_call.1} parent=1 // pred_region
      %265 = vsyncadd [#allocation4], 0
      %s266 = sshll.u32 [#allocation8], 4
      %s267 = int_to_ptr.vmem [resolvable:$true] %s266
      %s268 = sshll.u32 %s3, 4
      %s269 = int_to_ptr.hbm [resolvable:$true] %s268
      %274 = dma.vmem_to_hbm [thread:$0]  %s267, 128, %s269, [#allocation4], 64, 64, 4
    $region29: #{tpu_custom_call.1} parent=1 // pred_fallthru
      _
    // Predicated region
    $region30: #{tpu_custom_call.1} parent=1 // pred_check
      _
    $region31: #{tpu_custom_call.1} parent=1 // pred_check_branch
      %276 = sbr.rel (0) target = $region33
    $region32: #{tpu_custom_call.1} parent=1 // pred_region
      %278 = dma.done [#allocation4], 128
    $region33: #{tpu_custom_call.1} parent=1 // pred_fallthru
      _
    %279 = vsyncpa [#allocation3], 1
    %280 = vsyncpa [#allocation6], 1
    %281 = vsyncpa [#allocation4], 1

</llo_original>
